<compile_context>
chip_gen: v5e
topology: v5e:2x2
jax: 0.10.0
libtpu: 0.0.40
codegen_flags: <defaults>
</compile_context>

<pallas_src>
import jax
import jax.numpy as jnp
import numpy as np
from jax import lax
from jax.experimental import pallas as pl
from jax.experimental.pallas import tpu as pltpu

CIN, COUT, K, STRIDE, PAD = 256, 3, 4, 2, 1


def convt_kernel(zp_ref, w_ref, b_ref, o_ref):
    # zp_ref: (1, HP, WPr, CIN) bf16 zero-padded NHWC input (pad=1 top/left,
    #         >=1 bottom/right, WPr rounded up to a multiple of 8).
    # w_ref : (CIN, K*K*COUT) bf16 packed taps, column = (kh*K + kw)*COUT + co
    # b_ref : (1, 4*COUT) f32 bias tiled over the 4 parities
    # o_ref : (1, H, W, 4*COUT) f32, lane index = (ph*2 + pw)*COUT + co
    _, HP, WPr, cin = zp_ref.shape
    _, H, W, _ = o_ref.shape

    # One MXU matmul over the whole padded image, all 16 taps packed on N.
    lhs = zp_ref[0].reshape(HP * WPr, cin)                     # layout-trivial
    y = jnp.dot(lhs, w_ref[...], preferred_element_type=jnp.float32)
    y = y.reshape(HP, WPr, K * K * COUT)

    # Recombine:
    #   out[2m+ph, 2n+pw, co] =
    #     sum_{dh,dw in {0,1}} y[m+ph+dh, n+pw+dw, tap(3-ph-2dh, 3-pw-2dw), co]
    planes = []
    for ph in range(2):
        for pw in range(2):
            acc = None
            for dh in range(2):
                for dw in range(2):
                    kh = 3 - ph - 2 * dh
                    kw = 3 - pw - 2 * dw
                    c0 = (kh * K + kw) * COUT
                    term = y[ph + dh:ph + dh + H,
                             pw + dw:pw + dw + W,
                             c0:c0 + COUT]
                    acc = term if acc is None else acc + term
            planes.append(acc)
    out12 = jnp.concatenate(planes, axis=-1) + b_ref[...]
    o_ref[0] = out12


def vqvae_decoder(z, w, b):
    """z: (N, CIN, H, W) NCHW.  w: (CIN, COUT, K, K) PyTorch ConvTranspose2d
       weight.  b: (COUT,).  Returns (N, COUT, 2H, 2W) NCHW."""
    N, cin, H, W = z.shape
    assert cin == CIN
    OH, OW = STRIDE * H, STRIDE * W

    # --- glue: NCHW -> NHWC (channels on lanes), bf16, pad spatially by 1 ---
    z_nhwc = jnp.transpose(z, (0, 2, 3, 1)).astype(jnp.bfloat16)
    HP = H + 2
    WPr = ((W + 2 + 7) // 8) * 8                 # keep in-kernel reshape trivial
    zp = jnp.pad(z_nhwc, ((0, 0), (1, 1), (1, WPr - (W + 1)), (0, 0)))

    # packed taps: (CIN, 48), column = (kh*K + kw)*COUT + co ; bias tiled x4
    w_packed = jnp.transpose(w, (0, 2, 3, 1)).reshape(CIN, K * K * COUT)
    w_packed = w_packed.astype(jnp.bfloat16)
    b12 = jnp.tile(b.astype(jnp.float32), 4).reshape(1, 4 * COUT)

    out12 = pl.pallas_call(
        convt_kernel,
        out_shape=jax.ShapeDtypeStruct((N, H, W, 4 * COUT), jnp.float32),
        grid=(N,),
        in_specs=[
            pl.BlockSpec((1, HP, WPr, CIN), lambda n: (n, 0, 0, 0)),
            pl.BlockSpec((CIN, K * K * COUT), lambda n: (0, 0)),
            pl.BlockSpec((1, 4 * COUT), lambda n: (0, 0)),
        ],
        out_specs=pl.BlockSpec((1, H, W, 4 * COUT), lambda n: (n, 0, 0, 0)),
        compiler_params=pltpu.CompilerParams(
            dimension_semantics=("parallel",),
            vmem_limit_bytes=48 * 1024 * 1024),
    )(zp, w_packed, b12)

    # interleave the 4 parity planes and go back to NCHW (tiny 12-ch output)
    out = out12.reshape(N, H, W, 2, 2, COUT)
    out = jnp.transpose(out, (0, 5, 1, 3, 2, 4))   # (n, co, m, ph, n', pw)
    return out.reshape(N, COUT, OH, OW)


def reference(z, w, b):
    # ConvTranspose2d == dilated (fractionally-strided) correlation with the
    # flipped, channel-swapped kernel.
    w_lax = jnp.transpose(w[:, :, ::-1, ::-1], (1, 0, 2, 3))  # (COUT, CIN, K, K)
    y = lax.conv_general_dilated(
        z, w_lax, window_strides=(1, 1),
        padding=((K - 1 - PAD, K - 1 - PAD), (K - 1 - PAD, K - 1 - PAD)),
        lhs_dilation=(STRIDE, STRIDE), rhs_dilation=(1, 1),
        dimension_numbers=('NCHW', 'OIHW', 'NCHW'))
    return y + b[None, :, None, None]


if __name__ == "__main__":
    key = jax.random.PRNGKey(0)
    kz, kw, kb = jax.random.split(key, 3)

    N, H, W = 2, 8, 8
    z = jax.random.normal(kz, (N, CIN, H, W), jnp.float32)
    # deterministic synthetic parameters (ConvTranspose2d(256, 3, 4) shapes)
    w = 0.02 * jax.random.normal(kw, (CIN, COUT, K, K), jnp.float32)
    b = 0.1 * jax.random.normal(kb, (COUT,), jnp.float32)

    out = jax.jit(vqvae_decoder)(z, w, b)
    out = jax.block_until_ready(out)

    ref = jax.block_until_ready(reference(z, w, b))
    assert out.shape == (N, COUT, STRIDE * H, STRIDE * W), out.shape
    # bf16 MXU operands with f32 accumulation -> compare at a slightly looser
    # absolute tolerance.
    np.testing.assert_allclose(np.asarray(out), np.asarray(ref),
                               rtol=1e-2, atol=2e-2)
    print("KERNEL_OK")
</pallas_src>

<mosaic_0001>
module attributes {stable_mosaic.version = 11 : i64} {
  func.func @convt_kernel(%arg0: i32, %arg1: memref<1x10x16x256xbf16, #tpu.memory_space<vmem>>, %arg2: memref<256x48xbf16, #tpu.memory_space<vmem>>, %arg3: memref<1x12xf32, #tpu.memory_space<vmem>>, %arg4: memref<1x8x8x12xf32, #tpu.memory_space<vmem>>) attributes {dimension_semantics = [#tpu.dimension_semantics<parallel>], iteration_bounds = array<i64: 2>, scalar_prefetch = 0 : i64, scratch_operands = 0 : i64, tpu.core_type = #tpu.core_type<tc>, window_params = [{transform_indices = @transform_0, window_bounds = array<i64: 1, 10, 16, 256>}, {pipeline_mode = #tpu.pipeline_mode<synchronous>, transform_indices = @transform_1, window_bounds = array<i64: 256, 48>}, {pipeline_mode = #tpu.pipeline_mode<synchronous>, transform_indices = @transform_2, window_bounds = array<i64: 1, 12>}, {transform_indices = @transform_3, window_bounds = array<i64: 1, 8, 8, 12>}]} {
    %c0 = arith.constant 0 : index
    %c0_0 = arith.constant 0 : index
    %c0_1 = arith.constant 0 : index
    %c0_2 = arith.constant 0 : index
    %0 = vector.load %arg1[%c0, %c0_0, %c0_1, %c0_2] : memref<1x10x16x256xbf16, #tpu.memory_space<vmem>>, vector<1x10x16x256xbf16>
    %1 = vector.shape_cast %0 : vector<1x10x16x256xbf16> to vector<10x16x256xbf16>
    %2 = vector.shape_cast %1 : vector<10x16x256xbf16> to vector<160x256xbf16>
    %c0_3 = arith.constant 0 : index
    %c0_4 = arith.constant 0 : index
    %3 = vector.load %arg2[%c0_3, %c0_4] : memref<256x48xbf16, #tpu.memory_space<vmem>>, vector<256x48xbf16>
    %cst = arith.constant dense<0.000000e+00> : vector<160x48xf32>
    %4 = tpu.matmul %2, %3, %cst {dimension_numbers = #tpu.dot_dimension_numbers<[1], [0], [0], [1], [0, 0, 1, 1], [], []>} : vector<160x256xbf16>, vector<256x48xbf16>, vector<160x48xf32> -> vector<160x48xf32>
    %5 = vector.shape_cast %4 : vector<160x48xf32> to vector<10x16x48xf32>
    %6 = vector.extract_strided_slice %5 {offsets = [0, 0, 45], sizes = [8, 8, 3], strides = [1, 1, 1]} : vector<10x16x48xf32> to vector<8x8x3xf32>
    %7 = vector.extract_strided_slice %5 {offsets = [0, 1, 39], sizes = [8, 8, 3], strides = [1, 1, 1]} : vector<10x16x48xf32> to vector<8x8x3xf32>
    %8 = arith.addf %6, %7 : vector<8x8x3xf32>
    %9 = vector.extract_strided_slice %5 {offsets = [1, 0, 21], sizes = [8, 8, 3], strides = [1, 1, 1]} : vector<10x16x48xf32> to vector<8x8x3xf32>
    %10 = arith.addf %8, %9 : vector<8x8x3xf32>
    %11 = vector.extract_strided_slice %5 {offsets = [1, 1, 15], sizes = [8, 8, 3], strides = [1, 1, 1]} : vector<10x16x48xf32> to vector<8x8x3xf32>
    %12 = arith.addf %10, %11 : vector<8x8x3xf32>
    %13 = vector.extract_strided_slice %5 {offsets = [0, 1, 42], sizes = [8, 8, 3], strides = [1, 1, 1]} : vector<10x16x48xf32> to vector<8x8x3xf32>
    %14 = vector.extract_strided_slice %5 {offsets = [0, 2, 36], sizes = [8, 8, 3], strides = [1, 1, 1]} : vector<10x16x48xf32> to vector<8x8x3xf32>
    %15 = arith.addf %13, %14 : vector<8x8x3xf32>
    %16 = vector.extract_strided_slice %5 {offsets = [1, 1, 18], sizes = [8, 8, 3], strides = [1, 1, 1]} : vector<10x16x48xf32> to vector<8x8x3xf32>
    %17 = arith.addf %15, %16 : vector<8x8x3xf32>
    %18 = vector.extract_strided_slice %5 {offsets = [1, 2, 12], sizes = [8, 8, 3], strides = [1, 1, 1]} : vector<10x16x48xf32> to vector<8x8x3xf32>
    %19 = arith.addf %17, %18 : vector<8x8x3xf32>
    %20 = vector.extract_strided_slice %5 {offsets = [1, 0, 33], sizes = [8, 8, 3], strides = [1, 1, 1]} : vector<10x16x48xf32> to vector<8x8x3xf32>
    %21 = vector.extract_strided_slice %5 {offsets = [1, 1, 27], sizes = [8, 8, 3], strides = [1, 1, 1]} : vector<10x16x48xf32> to vector<8x8x3xf32>
    %22 = arith.addf %20, %21 : vector<8x8x3xf32>
    %23 = vector.extract_strided_slice %5 {offsets = [2, 0, 9], sizes = [8, 8, 3], strides = [1, 1, 1]} : vector<10x16x48xf32> to vector<8x8x3xf32>
    %24 = arith.addf %22, %23 : vector<8x8x3xf32>
    %25 = vector.extract_strided_slice %5 {offsets = [2, 1, 3], sizes = [8, 8, 3], strides = [1, 1, 1]} : vector<10x16x48xf32> to vector<8x8x3xf32>
    %26 = arith.addf %24, %25 : vector<8x8x3xf32>
    %27 = vector.extract_strided_slice %5 {offsets = [1, 1, 30], sizes = [8, 8, 3], strides = [1, 1, 1]} : vector<10x16x48xf32> to vector<8x8x3xf32>
    %28 = vector.extract_strided_slice %5 {offsets = [1, 2, 24], sizes = [8, 8, 3], strides = [1, 1, 1]} : vector<10x16x48xf32> to vector<8x8x3xf32>
    %29 = arith.addf %27, %28 : vector<8x8x3xf32>
    %30 = vector.extract_strided_slice %5 {offsets = [2, 1, 6], sizes = [8, 8, 3], strides = [1, 1, 1]} : vector<10x16x48xf32> to vector<8x8x3xf32>
    %31 = arith.addf %29, %30 : vector<8x8x3xf32>
    %32 = vector.extract_strided_slice %5 {offsets = [2, 2, 0], sizes = [8, 8, 3], strides = [1, 1, 1]} : vector<10x16x48xf32> to vector<8x8x3xf32>
    %33 = arith.addf %31, %32 : vector<8x8x3xf32>
    %34 = tpu.concatenate %12, %19, %26, %33 in 2 : vector<8x8x3xf32>, vector<8x8x3xf32>, vector<8x8x3xf32>, vector<8x8x3xf32> -> vector<8x8x12xf32>
    %c0_5 = arith.constant 0 : index
    %c0_6 = arith.constant 0 : index
    %35 = vector.load %arg3[%c0_5, %c0_6] : memref<1x12xf32, #tpu.memory_space<vmem>>, vector<1x12xf32>
    %36 = vector.shape_cast %35 : vector<1x12xf32> to vector<1x1x12xf32>
    %37 = vector.broadcast %36 : vector<1x1x12xf32> to vector<8x8x12xf32>
    %38 = arith.addf %34, %37 : vector<8x8x12xf32>
    %c0_7 = arith.constant 0 : index
    %c0_8 = arith.constant 0 : index
    %c0_9 = arith.constant 0 : index
    %c0_10 = arith.constant 0 : index
    %39 = vector.load %arg4[%c0_7, %c0_8, %c0_9, %c0_10] : memref<1x8x8x12xf32, #tpu.memory_space<vmem>>, vector<1x8x8x12xf32>
    %40 = vector.shape_cast %39 : vector<1x8x8x12xf32> to vector<8x8x12xf32>
    %41 = vector.shape_cast %38 : vector<8x8x12xf32> to vector<1x8x8x12xf32>
    tpu.vector_store %arg4[%c0_7, %c0_8, %c0_9, %c0_10], %41 {strides = array<i32>} : memref<1x8x8x12xf32, #tpu.memory_space<vmem>>, vector<1x8x8x12xf32>,
    return
  }
  func.func @transform_0(%arg0: i32) -> (i32, i32, i32, i32) {
    %c0_i32 = arith.constant 0 : i32
    %c0_i32_0 = arith.constant 0 : i32
    %c0_i32_1 = arith.constant 0 : i32
    %c0_i32_2 = arith.constant 0 : i32
    return %arg0, %c0_i32, %c0_i32_0, %c0_i32_1 : i32, i32, i32, i32
  }
  func.func @transform_1(%arg0: i32) -> (i32, i32) {
    %c0_i32 = arith.constant 0 : i32
    %c0_i32_0 = arith.constant 0 : i32
    %c0_i32_1 = arith.constant 0 : i32
    return %c0_i32, %c0_i32_0 : i32, i32
  }
  func.func @transform_2(%arg0: i32) -> (i32, i32) {
    %c0_i32 = arith.constant 0 : i32
    %c0_i32_0 = arith.constant 0 : i32
    %c0_i32_1 = arith.constant 0 : i32
    return %c0_i32, %c0_i32_0 : i32, i32
  }
  func.func @transform_3(%arg0: i32) -> (i32, i32, i32, i32) {
    %c0_i32 = arith.constant 0 : i32
    %c0_i32_0 = arith.constant 0 : i32
    %c0_i32_1 = arith.constant 0 : i32
    %c0_i32_2 = arith.constant 0 : i32
    return %arg0, %c0_i32, %c0_i32_0, %c0_i32_1 : i32, i32, i32, i32
  }
}

</mosaic_0001>

<llo_original>
// kernel: tile.9
$region0: #{tile.9}
  %s0 = inlined_call_operand.vmem [shape: f32[4,3], index: 0, kind: input, shape index: {}]
  %s1 = inlined_call_operand.vmem [shape: f32[1,12], index: 1, kind: output, shape index: {}]
  $region1: #{tile.9} parent=0
    #allocation0 [shape = 'u8[4096]{0}', space=vmem, size = 0x1000, scoped, tag = 'scoped mem for output reshape']
    #allocation1 [shape = 'u8[4096]{0}', space=vmem, size = 0x1000, scoped, tag = 'scoped mem for input reshape']
    %s3 = ssub.s32 16, 1
    %v4 = vld [vmem:[%s0] sm:%s3]
    %5 = vst [vmem:[#allocation1] sm:%s3] %v4
    %v6 = vld [vmem:[#allocation1] sm:$0x1]
    %vm7 = vcmask 23552
    %8 = vst.msk [vmem:[#allocation0] sm:$0x1] %vm7, %v6
    %s9 = scalar_lea.vmem [#allocation1], 3
    %v10 = vld [vmem:[%s9] sm:$0x1]
    %11 = vrot.lane.b32.xlu0 %v10, 9
    %v12 = vpop.permute.xlu0 %11
    %vm13 = vcmask 97352
    %14 = vst.msk [vmem:[#allocation0] sm:$0x1] %vm13, %v12
    %s15 = scalar_lea.vmem [#allocation1], 2
    %v16 = vld [vmem:[%s15] sm:$0x1]
    %17 = vrot.lane.b32.xlu0 %v16, 6
    %v18 = vpop.permute.xlu0 %17
    %vm19 = vcmask 72752
    %20 = vst.msk [vmem:[#allocation0] sm:$0x1] %vm19, %v18
    %s21 = scalar_lea.vmem [#allocation1], 1
    %v22 = vld [vmem:[%s21] sm:$0x1]
    %23 = vrot.lane.b32.xlu0 %v22, 3
    %v24 = vpop.permute.xlu0 %23
    %vm25 = vcmask 48152
    %26 = vst.msk [vmem:[#allocation0] sm:$0x1] %vm25, %v24
    %s28 = ssub.s32 2, 1
    %v29 = vld [vmem:[#allocation0] sm:%s28]
    %s31 = ssub.s32 2, 1
    %32 = vst [vmem:[%s1] sm:%s31] %v29

// kernel: tile.8
$region0: #{tile.8}
  #allocation0 [shape = 's32[1]{0}', space=sflag, size = 0x4, scoped, tag = 'scoped memory for tile.8']
  %s0 = inlined_call_operand.vmem [shape: f32[3], index: 0, kind: input, shape index: {}]
  %s1 = inlined_call_operand.vmem [shape: f32[4,3], index: 1, kind: output, shape index: {}]
  // Predicated region
  $region2: #{tile.8} parent=0 // pred_check
    _
  $region3: #{tile.8} parent=0 // pred_check_branch
    %3 = sbr.rel (0) target = $region5
  $region4: #{tile.8} parent=0 // pred_region
    _
  $region5: #{tile.8} parent=0 // pred_fallthru
    _
  %v4 = vld [vmem:[%s0] ss:$0 sm:$0xff]
  %5 = vst [vmem:[%s1] sm:$0xf] %v4

// kernel: vqvae_decoder.1
$region0: #{vqvae_decoder.1}
  #allocation0 [shape = 'u32[]', space=smem, size = 0x4, offset = 0x4, fixed_abs, tag = 'smem constant byte address 0x4 - core index']
  #allocation1 [shape = 'u32[72,128]{1,0:T(1,128)}', space=vmem, size = 0x9000, scoped, tag = 'internal scratch']
  %s0 = inlined_call_operand.vmem [shape: bf16[2,10,16,256], index: 0, kind: input, shape index: {}]
  %s1 = inlined_call_operand.vmem [shape: bf16[256,48], index: 1, kind: input, shape index: {}]
  %s2 = inlined_call_operand.vmem [shape: f32[1,12], index: 2, kind: input, shape index: {}]
  %s3 = inlined_call_operand.vmem [shape: f32[2,8,8,12], index: 3, kind: output, shape index: {}]
  %s4 = sld [smem:[#allocation0]]
  $region45: #{vqvae_decoder.1} parent=0
    _
  %s6 = ssub.s32 1, %s4
  %s7 = scalar_select 0, %s6, %s4
  loop: start=0, step=1, limit=4
  $region2: #{vqvae_decoder.1} parent=0 // loop_pre_header
    _
  $region3: #{vqvae_decoder.1} parent=0 // loop_header
    %s9 = sphi 0, %s13
    %p10 = scmp.ge.s32.totalorder %s9, 4
    %s19 = sphi 0, %s21
    %s22 = sphi 0, %s19
    %s23 = sphi 0, %s22
    %s39 = sphi 0, %s23
    %s43 = sphi 0, %s43
    %s45 = sphi 0, %s43
    %s46 = sphi 0, %s45
    %s60 = sphi 0, %s46
    %s64 = sphi 0, %s64
    %s66 = sphi 0, %s64
    %s67 = sphi 0, %s66
    %s81 = sphi 0, %s67
    %s87 = sphi 0, %s89
    %s90 = sphi 0, %s87
    %s91 = sphi 0, %s90
    %s107 = sphi 0, %s91
  $region4: #{vqvae_decoder.1} parent=0 // loop_header_branch
    %12 = sbr.rel (%p10) target = $region8
  $region5: #{vqvae_decoder.1} parent=0 // loop_body
    %s14 = ssub.s32 %s9, 1
    %s15 = ssub.s32 %s9, 2
    %s16 = sadd.s32 %s9, 1
    %s17 = ssub.s32 %s9, %s16
    %p18 = scmp.eq.s32.totalorder %s17, 0
    %s20 = sadd.s32 %s19, 1
    %s21 = scalar_select %p18, %s19, %s20
    %p24 = pneg %p18
    %p25 = scmp.eq.s32.totalorder %s9, 1
    %p26 = por %p24, %p25
    %p27 = scmp.ne.s32.totalorder %s19, %s22
    %p28 = scmp.eq.s32.totalorder %s9, 0
    %p29 = por %p27, %p28
    %p30 = scmp.ne.s32.totalorder %s19, %s22
    %p31 = scmp.eq.s32.totalorder %s14, 1
    %p32 = por %p30, %p31
    %p33 = scmp.ne.s32.totalorder %s22, %s23
    %p34 = scmp.eq.s32.totalorder %s14, 0
    %p35 = por %p33, %p34
    %p36 = scmp.ne.s32.totalorder %s22, %s23
    %p37 = scmp.eq.s32.totalorder %s15, 1
    %p38 = por %p36, %p37
    %p40 = scmp.ne.s32.totalorder %s23, %s39
    %p41 = scmp.eq.s32.totalorder %s15, 0
    %p42 = por %p40, %p41
    %s44 = sadd.s32 %s43, 1
    %p47 = scmp.eq.s32.totalorder %s9, 1
    %p48 = scmp.ne.s32.totalorder %s43, %s45
    %p49 = scmp.eq.s32.totalorder %s9, 0
    %p50 = por %p48, %p49
    %p51 = scmp.ne.s32.totalorder %s43, %s45
    %p52 = scmp.eq.s32.totalorder %s14, 1
    %p53 = por %p51, %p52
    %p54 = scmp.ne.s32.totalorder %s45, %s46
    %p55 = scmp.eq.s32.totalorder %s14, 0
    %p56 = por %p54, %p55
    %p57 = scmp.ne.s32.totalorder %s45, %s46
    %p58 = scmp.eq.s32.totalorder %s15, 1
    %p59 = por %p57, %p58
    %p61 = scmp.ne.s32.totalorder %s46, %s60
    %p62 = scmp.eq.s32.totalorder %s15, 0
    %p63 = por %p61, %p62
    %s65 = sadd.s32 %s64, 1
    %p68 = scmp.eq.s32.totalorder %s9, 1
    %p69 = scmp.ne.s32.totalorder %s64, %s66
    %p70 = scmp.eq.s32.totalorder %s9, 0
    %p71 = por %p69, %p70
    %p72 = scmp.ne.s32.totalorder %s64, %s66
    %p73 = scmp.eq.s32.totalorder %s14, 1
    %p74 = por %p72, %p73
    %p75 = scmp.ne.s32.totalorder %s66, %s67
    %p76 = scmp.eq.s32.totalorder %s14, 0
    %p77 = por %p75, %p76
    %p78 = scmp.ne.s32.totalorder %s66, %s67
    %p79 = scmp.eq.s32.totalorder %s15, 1
    %p80 = por %p78, %p79
    %p82 = scmp.ne.s32.totalorder %s67, %s81
    %p83 = scmp.eq.s32.totalorder %s15, 0
    %p84 = por %p82, %p83
    %s85 = ssub.s32 %s9, %s16
    %p86 = scmp.eq.s32.totalorder %s85, 0
    %s88 = sadd.s32 %s87, 1
    %s89 = scalar_select %p86, %s87, %s88
    %p92 = pneg %p86
    %p93 = scmp.eq.s32.totalorder %s9, 1
    %p94 = por %p92, %p93
    %p95 = scmp.ne.s32.totalorder %s87, %s90
    %p96 = scmp.eq.s32.totalorder %s9, 0
    %p97 = por %p95, %p96
    %p98 = scmp.ne.s32.totalorder %s87, %s90
    %p99 = scmp.eq.s32.totalorder %s14, 1
    %p100 = por %p98, %p99
    %p101 = scmp.ne.s32.totalorder %s90, %s91
    %p102 = scmp.eq.s32.totalorder %s14, 0
    %p103 = por %p101, %p102
    %p104 = scmp.ne.s32.totalorder %s90, %s91
    %p105 = scmp.eq.s32.totalorder %s15, 1
    %p106 = por %p104, %p105
    %p108 = scmp.ne.s32.totalorder %s91, %s107
    %p109 = scmp.eq.s32.totalorder %s15, 0
    %p110 = por %p108, %p109
    %p111 = scmp.le.s32.totalorder 1, %s9
    %p112 = scmp.lt.s32.totalorder %s9, 3
    %p113 = pnand %p111, %p112
    %p114 = pneg %p113
    // Predicated region
    $region9: #{vqvae_decoder.1} parent=5 // pred_check
      _
    $region10: #{vqvae_decoder.1} parent=5 // pred_check_branch
      %116 = sbr.rel (%p113) target = $region12
    $region11: #{vqvae_decoder.1} parent=5 // pred_region
      %s117 = ssub.s32 %s9, 1
      // Predicated region
      $region13: #{vqvae_decoder.1} parent=11 // pred_check
        %p118 = pneg %p56
      $region14: #{vqvae_decoder.1} parent=11 // pred_check_branch
        %120 = sbr.rel (%p118) target = $region16
      $region15: #{vqvae_decoder.1} parent=11 // pred_region
        _
      $region16: #{vqvae_decoder.1} parent=11 // pred_fallthru
        _
      // Predicated region
      $region17: #{vqvae_decoder.1} parent=11 // pred_check
        %p121 = pneg %p77
      $region18: #{vqvae_decoder.1} parent=11 // pred_check_branch
        %123 = sbr.rel (%p121) target = $region20
      $region19: #{vqvae_decoder.1} parent=11 // pred_region
        _
      $region20: #{vqvae_decoder.1} parent=11 // pred_fallthru
        _
    $region12: #{vqvae_decoder.1} parent=5 // pred_fallthru
      _
    %p124 = scmp.lt.s32.totalorder %s9, 2
    // Predicated region
    $region21: #{vqvae_decoder.1} parent=5 // pred_check
      %p125 = pneg %p124
    $region22: #{vqvae_decoder.1} parent=5 // pred_check_branch
      %127 = sbr.rel (%p125) target = $region24
    $region23: #{vqvae_decoder.1} parent=5 // pred_region
      // Predicated region
      $region25: #{vqvae_decoder.1} parent=23 // pred_check
        %p128 = pneg %p29
      $region26: #{vqvae_decoder.1} parent=23 // pred_check_branch
        %130 = sbr.rel (%p128) target = $region28
      $region27: #{vqvae_decoder.1} parent=23 // pred_region
        %p131 = scmp.lt.s32.totalorder %s9, 1
        %s132 = scalar_select %p131, %s9, 1
        %s133 = smul.addr %s132, 40
        %s134 = smul.addr %s133, 4
        %s135 = scalar_lea.vmem %s0, %s134
      $region28: #{vqvae_decoder.1} parent=23 // pred_fallthru
        _
    $region24: #{vqvae_decoder.1} parent=5 // pred_fallthru
      _
    %p136 = scmp.le.s32.totalorder 1, %s9
    %p137 = scmp.lt.s32.totalorder %s9, 3
    %p138 = pnand %p136, %p137
    %p139 = pneg %p138
    // Predicated region
    $region29: #{vqvae_decoder.1} parent=5 // pred_check
      _
    $region30: #{vqvae_decoder.1} parent=5 // pred_check_branch
      %141 = sbr.rel (%p138) target = $region32
    $region31: #{vqvae_decoder.1} parent=5 // pred_region
      %s142 = ssub.s32 %s9, 1
      %p143 = scmp.lt.s32.totalorder %s14, 1
      %s144 = scalar_select %p143, %s14, 1
      %s145 = smul.addr %s144, 40
      %s146 = smul.addr %s145, 4
      %s147 = scalar_lea.vmem %s0, %s146
      %p148 = pneg %p35
      %p149 = pneg %p32
      %p150 = pneg %p56
      %p151 = pneg %p53
      %p152 = pneg %p77
      %p153 = pneg %p74
      %p154 = pneg %p103
      %p155 = pneg %p100
      %p156 = scmp.lt.s32.totalorder %s14, 1
      %s157 = scalar_select %p156, %s14, 1
      %s158 = smul.addr %s157, 8
      %s159 = smul.addr %s158, 8
      %s160 = scalar_lea.vmem %s3, %s159
      %p161 = scmp.lt.s32.totalorder %s14, 1
      %s162 = scalar_select %p161, %s14, 1
      %s163 = smul.addr %s162, 40
      %s164 = smul.addr %s163, 4
      %s165 = scalar_lea.vmem %s0, %s164
      %p166 = scmp.lt.s32.totalorder %s14, 1
      %s167 = scalar_select %p166, %s14, 1
      %s168 = smul.addr %s167, 8
      %s169 = smul.addr %s168, 8
      %s170 = scalar_lea.vmem %s3, %s169
      %v171 = vld [vmem:[%s165] sm:$0xff]
      %v172 = vld [vmem:[%s165 + $0x8] sm:$0xff]
      %v173 = vld [vmem:[%s165 + $0x10] sm:$0xff]
      %v174 = vld [vmem:[%s165 + $0x18] sm:$0xff]
      %v175 = vld [vmem:[%s165 + $0x20] sm:$0xff]
      %v176 = vld [vmem:[%s165 + $0x28] sm:$0xff]
      %v177 = vld [vmem:[%s165 + $0x30] sm:$0xff]
      %v178 = vld [vmem:[%s165 + $0x38] sm:$0xff]
      %v179 = vld [vmem:[%s165 + $0x40] sm:$0xff]
      %v180 = vld [vmem:[%s165 + $0x48] sm:$0xff]
      %v181 = vld [vmem:[%s165 + $0x50] sm:$0xff]
      %v182 = vld [vmem:[%s165 + $0x58] sm:$0xff]
      %v183 = vld [vmem:[%s165 + $0x60] sm:$0xff]
      %v184 = vld [vmem:[%s165 + $0x68] sm:$0xff]
      %v185 = vld [vmem:[%s165 + $0x70] sm:$0xff]
      %v186 = vld [vmem:[%s165 + $0x78] sm:$0xff]
      %v187 = vld [vmem:[%s165 + $0x80] sm:$0xff]
      %v188 = vld [vmem:[%s165 + $0x88] sm:$0xff]
      %v189 = vld [vmem:[%s165 + $0x90] sm:$0xff]
      %v190 = vld [vmem:[%s165 + $0x98] sm:$0xff]
      %v191 = vld [vmem:[%s1] sm:$0xf]
      %v192 = vld [vmem:[%s1 + $0x4] sm:$0xf]
      %v193 = vld [vmem:[%s1 + $0x8] sm:$0xf]
      %v194 = vld [vmem:[%s1 + $0xc] sm:$0xf]
      %v195 = vld [vmem:[%s1 + $0x10] sm:$0xf]
      %v196 = vld [vmem:[%s1 + $0x14] sm:$0xf]
      %v197 = vld [vmem:[%s1 + $0x18] sm:$0xf]
      %v198 = vld [vmem:[%s1 + $0x1c] sm:$0xf]
      %v199 = vld [vmem:[%s1 + $0x20] sm:$0xf]
      %v200 = vld [vmem:[%s1 + $0x24] sm:$0xf]
      %v201 = vld [vmem:[%s1 + $0x28] sm:$0xf]
      %v202 = vld [vmem:[%s1 + $0x2c] sm:$0xf]
      %v203 = vld [vmem:[%s1 + $0x30] sm:$0xf]
      %v204 = vld [vmem:[%s1 + $0x34] sm:$0xf]
      %v205 = vld [vmem:[%s1 + $0x38] sm:$0xf]
      %v206 = vld [vmem:[%s1 + $0x3c] sm:$0xf]
      %v207 = vld [vmem:[%s1 + $0x40] sm:$0xf]
      %v208 = vld [vmem:[%s1 + $0x44] sm:$0xf]
      %v209 = vld [vmem:[%s1 + $0x48] sm:$0xf]
      %v210 = vld [vmem:[%s1 + $0x4c] sm:$0xf]
      %v211 = vld [vmem:[%s1 + $0x50] sm:$0xf]
      %v212 = vld [vmem:[%s1 + $0x54] sm:$0xf]
      %v213 = vld [vmem:[%s1 + $0x58] sm:$0xf]
      %v214 = vld [vmem:[%s1 + $0x5c] sm:$0xf]
      %v215 = vld [vmem:[%s1 + $0x60] sm:$0xf]
      %v216 = vld [vmem:[%s1 + $0x64] sm:$0xf]
      %v217 = vld [vmem:[%s1 + $0x68] sm:$0xf]
      %v218 = vld [vmem:[%s1 + $0x6c] sm:$0xf]
      %v219 = vld [vmem:[%s1 + $0x70] sm:$0xf]
      %v220 = vld [vmem:[%s1 + $0x74] sm:$0xf]
      %v221 = vld [vmem:[%s1 + $0x78] sm:$0xf]
      %v222 = vld [vmem:[%s1 + $0x7c] sm:$0xf]
      %v243 = vunpack.c.l.b16 %v171
      %v244 = vunpack.c.h.b16 %v171
      %v245 = vunpack.c.l.b16 %v172
      %v246 = vunpack.c.h.b16 %v172
      %v247 = vunpack.c.l.b16 %v173
      %v248 = vunpack.c.h.b16 %v173
      %v249 = vunpack.c.l.b16 %v174
      %v250 = vunpack.c.h.b16 %v174
      %v251 = vunpack.c.l.b16 %v175
      %v252 = vunpack.c.h.b16 %v175
      %v253 = vunpack.c.l.b16 %v176
      %v254 = vunpack.c.h.b16 %v176
      %v255 = vunpack.c.l.b16 %v177
      %v256 = vunpack.c.h.b16 %v177
      %v257 = vunpack.c.l.b16 %v178
      %v258 = vunpack.c.h.b16 %v178
      %v259 = vunpack.c.l.b16 %v179
      %v260 = vunpack.c.h.b16 %v179
      %v261 = vunpack.c.l.b16 %v180
      %v262 = vunpack.c.h.b16 %v180
      %v263 = vunpack.c.l.b16 %v181
      %v264 = vunpack.c.h.b16 %v181
      %v265 = vunpack.c.l.b16 %v182
      %v266 = vunpack.c.h.b16 %v182
      %v267 = vunpack.c.l.b16 %v183
      %v268 = vunpack.c.h.b16 %v183
      %v269 = vunpack.c.l.b16 %v184
      %v270 = vunpack.c.h.b16 %v184
      %v271 = vunpack.c.l.b16 %v185
      %v272 = vunpack.c.h.b16 %v185
      %v273 = vunpack.c.l.b16 %v186
      %v274 = vunpack.c.h.b16 %v186
      %v275 = vunpack.c.l.b16 %v187
      %v276 = vunpack.c.h.b16 %v187
      %v277 = vunpack.c.l.b16 %v188
      %v278 = vunpack.c.h.b16 %v188
      %v279 = vunpack.c.l.b16 %v189
      %v280 = vunpack.c.h.b16 %v189
      %v281 = vunpack.c.l.b16 %v190
      %v282 = vunpack.c.h.b16 %v190
      %v283 = vpack.c.b16 %v245, %v243
      %v284 = vpack.c.b16 %v246, %v244
      %v285 = vpack.c.b16 %v249, %v247
      %v286 = vpack.c.b16 %v250, %v248
      %v287 = vpack.c.b16 %v253, %v251
      %v288 = vpack.c.b16 %v254, %v252
      %v289 = vpack.c.b16 %v257, %v255
      %v290 = vpack.c.b16 %v258, %v256
      %v291 = vpack.c.b16 %v261, %v259
      %v292 = vpack.c.b16 %v262, %v260
      %v293 = vpack.c.b16 %v265, %v263
      %v294 = vpack.c.b16 %v266, %v264
      %v295 = vpack.c.b16 %v269, %v267
      %v296 = vpack.c.b16 %v270, %v268
      %v297 = vpack.c.b16 %v273, %v271
      %v298 = vpack.c.b16 %v274, %v272
      %v299 = vpack.c.b16 %v277, %v275
      %v300 = vpack.c.b16 %v278, %v276
      %v301 = vpack.c.b16 %v281, %v279
      %v302 = vpack.c.b16 %v282, %v280
      %v355 = vunpack.c.l.b16 %v191
      %v356 = vunpack.c.l.b16 %v192
      %v357 = vunpack.c.l.b16 %v193
      %v358 = vunpack.c.l.b16 %v194
      %v359 = vunpack.c.l.b16 %v195
      %v360 = vunpack.c.l.b16 %v196
      %v361 = vunpack.c.l.b16 %v197
      %v362 = vunpack.c.l.b16 %v198
      %v363 = vunpack.c.l.b16 %v199
      %v364 = vunpack.c.l.b16 %v200
      %v365 = vunpack.c.l.b16 %v201
      %v366 = vunpack.c.l.b16 %v202
      %v367 = vunpack.c.l.b16 %v203
      %v368 = vunpack.c.l.b16 %v204
      %v369 = vunpack.c.l.b16 %v205
      %v370 = vunpack.c.l.b16 %v206
      %v371 = vunpack.c.l.b16 %v207
      %v372 = vunpack.c.l.b16 %v208
      %v373 = vunpack.c.l.b16 %v209
      %v374 = vunpack.c.l.b16 %v210
      %v375 = vunpack.c.l.b16 %v211
      %v376 = vunpack.c.l.b16 %v212
      %v377 = vunpack.c.l.b16 %v213
      %v378 = vunpack.c.l.b16 %v214
      %v379 = vunpack.c.l.b16 %v215
      %v380 = vunpack.c.l.b16 %v216
      %v381 = vunpack.c.l.b16 %v217
      %v382 = vunpack.c.l.b16 %v218
      %v383 = vunpack.c.l.b16 %v219
      %v384 = vunpack.c.l.b16 %v220
      %v385 = vunpack.c.l.b16 %v221
      %v386 = vunpack.c.l.b16 %v222
      %v387 = vpack.c.b16 %v356, %v355
      %v388 = vpack.c.b16 %v358, %v357
      %v389 = vpack.c.b16 %v360, %v359
      %v390 = vpack.c.b16 %v362, %v361
      %v391 = vpack.c.b16 %v364, %v363
      %v392 = vpack.c.b16 %v366, %v365
      %v393 = vpack.c.b16 %v368, %v367
      %v394 = vpack.c.b16 %v370, %v369
      %v395 = vpack.c.b16 %v372, %v371
      %v396 = vpack.c.b16 %v374, %v373
      %v397 = vpack.c.b16 %v376, %v375
      %v398 = vpack.c.b16 %v378, %v377
      %v399 = vpack.c.b16 %v380, %v379
      %v400 = vpack.c.b16 %v382, %v381
      %v401 = vpack.c.b16 %v384, %v383
      %v402 = vpack.c.b16 %v386, %v385
      %419 = vmatpush.bf16.msra.mxu0 %v394
      %420 = vmatpush.bf16.msra.mxu0 %v393
      %421 = vmatpush.bf16.msra.mxu0 %v392
      %422 = vmatpush.bf16.msra.mxu0 %v391
      %423 = vmatpush.bf16.msra.mxu0 %v390
      %424 = vmatpush.bf16.msra.mxu0 %v389
      %425 = vmatpush.bf16.msra.mxu0 %v388
      %426 = vmatpush.bf16.msra.mxu0 %v387
      %427 = vmatmul.bf16.gmra.mxu0 %v283
      %v428 = vpop.f32.mrf.mxu0
      %v429 = vadd.f32 0.0, %v428
      %v430 = vpop.f32.mrf.mxu0
      %v431 = vadd.f32 0.0, %v430
      %432 = vmatmul.bf16.gmra.mxu0 %v285
      %v433 = vpop.f32.mrf.mxu0
      %v434 = vadd.f32 0.0, %v433
      %v435 = vpop.f32.mrf.mxu0
      %v436 = vadd.f32 0.0, %v435
      %437 = vmatmul.bf16.gmra.mxu0 %v287
      %v438 = vpop.f32.mrf.mxu0
      %v439 = vadd.f32 0.0, %v438
      %v440 = vpop.f32.mrf.mxu0
      %v441 = vadd.f32 0.0, %v440
      %442 = vmatmul.bf16.gmra.mxu0 %v289
      %v443 = vpop.f32.mrf.mxu0
      %v444 = vadd.f32 0.0, %v443
      %v445 = vpop.f32.mrf.mxu0
      %v446 = vadd.f32 0.0, %v445
      %447 = vmatmul.bf16.gmra.mxu0 %v291
      %v448 = vpop.f32.mrf.mxu0
      %v449 = vadd.f32 0.0, %v448
      %v450 = vpop.f32.mrf.mxu0
      %v451 = vadd.f32 0.0, %v450
      %452 = vmatmul.bf16.gmra.mxu0 %v293
      %v453 = vpop.f32.mrf.mxu0
      %v454 = vadd.f32 0.0, %v453
      %v455 = vpop.f32.mrf.mxu0
      %v456 = vadd.f32 0.0, %v455
      %457 = vmatmul.bf16.gmra.mxu0 %v295
      %v458 = vpop.f32.mrf.mxu0
      %v459 = vadd.f32 0.0, %v458
      %v460 = vpop.f32.mrf.mxu0
      %v461 = vadd.f32 0.0, %v460
      %462 = vmatmul.bf16.gmra.mxu0 %v297
      %v463 = vpop.f32.mrf.mxu0
      %v464 = vadd.f32 0.0, %v463
      %v465 = vpop.f32.mrf.mxu0
      %v466 = vadd.f32 0.0, %v465
      %467 = vmatmul.bf16.gmra.mxu0 %v299
      %v468 = vpop.f32.mrf.mxu0
      %v469 = vadd.f32 0.0, %v468
      %v470 = vpop.f32.mrf.mxu0
      %v471 = vadd.f32 0.0, %v470
      %472 = vmatmul.bf16.gmra.mxu0 %v301
      %v473 = vpop.f32.mrf.mxu0
      %v474 = vadd.f32 0.0, %v473
      %v475 = vpop.f32.mrf.mxu0
      %v476 = vadd.f32 0.0, %v475
      %477 = vdwg.mxu0
      %478 = vmatpush.bf16.msra.mxu0 %v402
      %479 = vmatpush.bf16.msra.mxu0 %v401
      %480 = vmatpush.bf16.msra.mxu0 %v400
      %481 = vmatpush.bf16.msra.mxu0 %v399
      %482 = vmatpush.bf16.msra.mxu0 %v398
      %483 = vmatpush.bf16.msra.mxu0 %v397
      %484 = vmatpush.bf16.msra.mxu0 %v396
      %485 = vmatpush.bf16.msra.mxu0 %v395
      %486 = vmatmul.bf16.gmra.mxu0 %v284
      %v487 = vpop.f32.mrf.mxu0
      %v488 = vadd.f32 %v429, %v487
      %v489 = vpop.f32.mrf.mxu0
      %v490 = vadd.f32 %v431, %v489
      %491 = vmatmul.bf16.gmra.mxu0 %v286
      %v492 = vpop.f32.mrf.mxu0
      %v493 = vadd.f32 %v434, %v492
      %v494 = vpop.f32.mrf.mxu0
      %v495 = vadd.f32 %v436, %v494
      %496 = vmatmul.bf16.gmra.mxu0 %v288
      %v497 = vpop.f32.mrf.mxu0
      %v498 = vadd.f32 %v439, %v497
      %v499 = vpop.f32.mrf.mxu0
      %v500 = vadd.f32 %v441, %v499
      %501 = vmatmul.bf16.gmra.mxu0 %v290
      %v502 = vpop.f32.mrf.mxu0
      %v503 = vadd.f32 %v444, %v502
      %v504 = vpop.f32.mrf.mxu0
      %v505 = vadd.f32 %v446, %v504
      %506 = vmatmul.bf16.gmra.mxu0 %v292
      %v507 = vpop.f32.mrf.mxu0
      %v508 = vadd.f32 %v449, %v507
      %v509 = vpop.f32.mrf.mxu0
      %v510 = vadd.f32 %v451, %v509
      %511 = vmatmul.bf16.gmra.mxu0 %v294
      %v512 = vpop.f32.mrf.mxu0
      %v513 = vadd.f32 %v454, %v512
      %v514 = vpop.f32.mrf.mxu0
      %v515 = vadd.f32 %v456, %v514
      %516 = vmatmul.bf16.gmra.mxu0 %v296
      %v517 = vpop.f32.mrf.mxu0
      %v518 = vadd.f32 %v459, %v517
      %v519 = vpop.f32.mrf.mxu0
      %v520 = vadd.f32 %v461, %v519
      %521 = vmatmul.bf16.gmra.mxu0 %v298
      %v522 = vpop.f32.mrf.mxu0
      %v523 = vadd.f32 %v464, %v522
      %v524 = vpop.f32.mrf.mxu0
      %v525 = vadd.f32 %v466, %v524
      %526 = vmatmul.bf16.gmra.mxu0 %v300
      %v527 = vpop.f32.mrf.mxu0
      %v528 = vadd.f32 %v469, %v527
      %v529 = vpop.f32.mrf.mxu0
      %v530 = vadd.f32 %v471, %v529
      %531 = vmatmul.bf16.gmra.mxu0 %v302
      %v532 = vpop.f32.mrf.mxu0
      %v533 = vadd.f32 %v474, %v532
      %v534 = vpop.f32.mrf.mxu0
      %v535 = vadd.f32 %v476, %v534
      %536 = vdwg.mxu0
      %vm553 = vcmask 1046528
      %v554 = vrot.slane %v488, 1
      %v555 = vrot.slane %v490, 1
      %v556 = vsel %vm553, %v554, %v555
      %v557 = vrot.slane %v493, 1
      %v558 = vrot.slane %v495, 1
      %v559 = vsel %vm553, %v557, %v558
      %v560 = vrot.slane %v498, 1
      %v561 = vrot.slane %v500, 1
      %v562 = vsel %vm553, %v560, %v561
      %v563 = vrot.slane %v503, 1
      %v564 = vrot.slane %v505, 1
      %v565 = vsel %vm553, %v563, %v564
      %v566 = vrot.slane %v508, 1
      %v567 = vrot.slane %v510, 1
      %v568 = vsel %vm553, %v566, %v567
      %v569 = vrot.slane %v513, 1
      %v570 = vrot.slane %v515, 1
      %v571 = vsel %vm553, %v569, %v570
      %v572 = vrot.slane %v518, 1
      %v573 = vrot.slane %v520, 1
      %v574 = vsel %vm553, %v572, %v573
      %v575 = vrot.slane %v523, 1
      %v576 = vrot.slane %v525, 1
      %v577 = vsel %vm553, %v575, %v576
      %578 = vrot.lane.b32.xlu0 %v556, 6
      %v579 = vpop.permute.xlu0 %578
      %580 = vrot.lane.b32.xlu0 %v559, 6
      %v581 = vpop.permute.xlu0 %580
      %582 = vrot.lane.b32.xlu0 %v562, 6
      %v583 = vpop.permute.xlu0 %582
      %584 = vrot.lane.b32.xlu0 %v565, 6
      %v585 = vpop.permute.xlu0 %584
      %586 = vrot.lane.b32.xlu0 %v568, 6
      %v587 = vpop.permute.xlu0 %586
      %588 = vrot.lane.b32.xlu0 %v571, 6
      %v589 = vpop.permute.xlu0 %588
      %590 = vrot.lane.b32.xlu0 %v574, 6
      %v591 = vpop.permute.xlu0 %590
      %592 = vrot.lane.b32.xlu0 %v577, 6
      %v593 = vpop.permute.xlu0 %592
      %v602 = vadd.f32 %v488, %v579
      %v603 = vadd.f32 %v493, %v581
      %v604 = vadd.f32 %v498, %v583
      %v605 = vadd.f32 %v503, %v585
      %v606 = vadd.f32 %v508, %v587
      %v607 = vadd.f32 %v513, %v589
      %v608 = vadd.f32 %v518, %v591
      %v609 = vadd.f32 %v523, %v593
      %611 = vrot.lane.b32.xlu0 %v493, 24
      %v612 = vpop.permute.xlu0 %611
      %613 = vrot.lane.b32.xlu0 %v498, 24
      %v614 = vpop.permute.xlu0 %613
      %615 = vrot.lane.b32.xlu0 %v503, 24
      %v616 = vpop.permute.xlu0 %615
      %617 = vrot.lane.b32.xlu0 %v508, 24
      %v618 = vpop.permute.xlu0 %617
      %619 = vrot.lane.b32.xlu0 %v513, 24
      %v620 = vpop.permute.xlu0 %619
      %621 = vrot.lane.b32.xlu0 %v518, 24
      %v622 = vpop.permute.xlu0 %621
      %623 = vrot.lane.b32.xlu0 %v523, 24
      %v624 = vpop.permute.xlu0 %623
      %625 = vrot.lane.b32.xlu0 %v528, 24
      %v626 = vpop.permute.xlu0 %625
      %v635 = vadd.f32 %v602, %v612
      %v636 = vadd.f32 %v603, %v614
      %v637 = vadd.f32 %v604, %v616
      %v638 = vadd.f32 %v605, %v618
      %v639 = vadd.f32 %v606, %v620
      %v640 = vadd.f32 %v607, %v622
      %v641 = vadd.f32 %v608, %v624
      %v642 = vadd.f32 %v609, %v626
      %v644 = vrot.slane %v528, 1
      %v645 = vrot.slane %v530, 1
      %v646 = vsel %vm553, %v644, %v645
      %647 = vrot.lane.b32.xlu0 %v559, 30
      %v648 = vpop.permute.xlu0 %647
      %649 = vrot.lane.b32.xlu0 %v562, 30
      %v650 = vpop.permute.xlu0 %649
      %651 = vrot.lane.b32.xlu0 %v565, 30
      %v652 = vpop.permute.xlu0 %651
      %653 = vrot.lane.b32.xlu0 %v568, 30
      %v654 = vpop.permute.xlu0 %653
      %655 = vrot.lane.b32.xlu0 %v571, 30
      %v656 = vpop.permute.xlu0 %655
      %657 = vrot.lane.b32.xlu0 %v574, 30
      %v658 = vpop.permute.xlu0 %657
      %659 = vrot.lane.b32.xlu0 %v577, 30
      %v660 = vpop.permute.xlu0 %659
      %661 = vrot.lane.b32.xlu0 %v646, 30
      %v662 = vpop.permute.xlu0 %661
      %v671 = vadd.f32 %v635, %v648
      %v672 = vadd.f32 %v636, %v650
      %v673 = vadd.f32 %v637, %v652
      %v674 = vadd.f32 %v638, %v654
      %v675 = vadd.f32 %v639, %v656
      %v676 = vadd.f32 %v640, %v658
      %v677 = vadd.f32 %v641, %v660
      %v678 = vadd.f32 %v642, %v662
      %679 = vrot.lane.b32.xlu0 %v555, 6
      %v680 = vpop.permute.xlu0 %679
      %681 = vrot.lane.b32.xlu0 %v558, 6
      %v682 = vpop.permute.xlu0 %681
      %683 = vrot.lane.b32.xlu0 %v561, 6
      %v684 = vpop.permute.xlu0 %683
      %685 = vrot.lane.b32.xlu0 %v564, 6
      %v686 = vpop.permute.xlu0 %685
      %687 = vrot.lane.b32.xlu0 %v567, 6
      %v688 = vpop.permute.xlu0 %687
      %689 = vrot.lane.b32.xlu0 %v570, 6
      %v690 = vpop.permute.xlu0 %689
      %691 = vrot.lane.b32.xlu0 %v573, 6
      %v692 = vpop.permute.xlu0 %691
      %693 = vrot.lane.b32.xlu0 %v576, 6
      %v694 = vpop.permute.xlu0 %693
      %v703 = vadd.f32 %v490, %v680
      %v704 = vadd.f32 %v495, %v682
      %v705 = vadd.f32 %v500, %v684
      %v706 = vadd.f32 %v505, %v686
      %v707 = vadd.f32 %v510, %v688
      %v708 = vadd.f32 %v515, %v690
      %v709 = vadd.f32 %v520, %v692
      %v710 = vadd.f32 %v525, %v694
      %711 = vrot.lane.b32.xlu0 %v495, 24
      %v712 = vpop.permute.xlu0 %711
      %713 = vrot.lane.b32.xlu0 %v500, 24
      %v714 = vpop.permute.xlu0 %713
      %715 = vrot.lane.b32.xlu0 %v505, 24
      %v716 = vpop.permute.xlu0 %715
      %717 = vrot.lane.b32.xlu0 %v510, 24
      %v718 = vpop.permute.xlu0 %717
      %719 = vrot.lane.b32.xlu0 %v515, 24
      %v720 = vpop.permute.xlu0 %719
      %721 = vrot.lane.b32.xlu0 %v520, 24
      %v722 = vpop.permute.xlu0 %721
      %723 = vrot.lane.b32.xlu0 %v525, 24
      %v724 = vpop.permute.xlu0 %723
      %725 = vrot.lane.b32.xlu0 %v530, 24
      %v726 = vpop.permute.xlu0 %725
      %v735 = vadd.f32 %v703, %v712
      %v736 = vadd.f32 %v704, %v714
      %v737 = vadd.f32 %v705, %v716
      %v738 = vadd.f32 %v706, %v718
      %v739 = vadd.f32 %v707, %v720
      %v740 = vadd.f32 %v708, %v722
      %v741 = vadd.f32 %v709, %v724
      %v742 = vadd.f32 %v710, %v726
      %743 = vrot.lane.b32.xlu0 %v558, 30
      %v744 = vpop.permute.xlu0 %743
      %745 = vrot.lane.b32.xlu0 %v561, 30
      %v746 = vpop.permute.xlu0 %745
      %747 = vrot.lane.b32.xlu0 %v564, 30
      %v748 = vpop.permute.xlu0 %747
      %749 = vrot.lane.b32.xlu0 %v567, 30
      %v750 = vpop.permute.xlu0 %749
      %751 = vrot.lane.b32.xlu0 %v570, 30
      %v752 = vpop.permute.xlu0 %751
      %753 = vrot.lane.b32.xlu0 %v573, 30
      %v754 = vpop.permute.xlu0 %753
      %755 = vrot.lane.b32.xlu0 %v576, 30
      %v756 = vpop.permute.xlu0 %755
      %757 = vrot.lane.b32.xlu0 %v645, 30
      %v758 = vpop.permute.xlu0 %757
      %v767 = vadd.f32 %v735, %v744
      %v768 = vadd.f32 %v736, %v746
      %v769 = vadd.f32 %v737, %v748
      %v770 = vadd.f32 %v738, %v750
      %v771 = vadd.f32 %v739, %v752
      %v772 = vadd.f32 %v740, %v754
      %v773 = vadd.f32 %v741, %v756
      %v774 = vadd.f32 %v742, %v758
      %775 = vrot.lane.b32.xlu0 %v646, 6
      %v776 = vpop.permute.xlu0 %775
      %v778 = vadd.f32 %v528, %v776
      %780 = vrot.lane.b32.xlu0 %v533, 24
      %v781 = vpop.permute.xlu0 %780
      %v783 = vadd.f32 %v778, %v781
      %v785 = vrot.slane %v533, 1
      %v786 = vrot.slane %v535, 1
      %v787 = vsel %vm553, %v785, %v786
      %788 = vrot.lane.b32.xlu0 %v787, 30
      %v789 = vpop.permute.xlu0 %788
      %v791 = vadd.f32 %v783, %v789
      %792 = vrot.lane.b32.xlu0 %v645, 6
      %v793 = vpop.permute.xlu0 %792
      %v795 = vadd.f32 %v530, %v793
      %796 = vrot.lane.b32.xlu0 %v535, 24
      %v797 = vpop.permute.xlu0 %796
      %v799 = vadd.f32 %v795, %v797
      %800 = vrot.lane.b32.xlu0 %v786, 30
      %v801 = vpop.permute.xlu0 %800
      %v803 = vadd.f32 %v799, %v801
      %812 = vrot.lane.b32.xlu0 %v671, 83
      %v813 = vpop.permute.xlu0 %812
      %814 = vrot.lane.b32.xlu0 %v672, 83
      %v815 = vpop.permute.xlu0 %814
      %816 = vrot.lane.b32.xlu0 %v673, 83
      %v817 = vpop.permute.xlu0 %816
      %818 = vrot.lane.b32.xlu0 %v674, 83
      %v819 = vpop.permute.xlu0 %818
      %820 = vrot.lane.b32.xlu0 %v675, 83
      %v821 = vpop.permute.xlu0 %820
      %822 = vrot.lane.b32.xlu0 %v676, 83
      %v823 = vpop.permute.xlu0 %822
      %824 = vrot.lane.b32.xlu0 %v677, 83
      %v825 = vpop.permute.xlu0 %824
      %826 = vrot.lane.b32.xlu0 %v678, 83
      %v827 = vpop.permute.xlu0 %826
      %v844 = vrot.slane %v671, 1
      %v845 = vrot.slane %v767, 1
      %v846 = vsel %vm553, %v844, %v845
      %v847 = vrot.slane %v672, 1
      %v848 = vrot.slane %v768, 1
      %v849 = vsel %vm553, %v847, %v848
      %v850 = vrot.slane %v673, 1
      %v851 = vrot.slane %v769, 1
      %v852 = vsel %vm553, %v850, %v851
      %v853 = vrot.slane %v674, 1
      %v854 = vrot.slane %v770, 1
      %v855 = vsel %vm553, %v853, %v854
      %v856 = vrot.slane %v675, 1
      %v857 = vrot.slane %v771, 1
      %v858 = vsel %vm553, %v856, %v857
      %v859 = vrot.slane %v676, 1
      %v860 = vrot.slane %v772, 1
      %v861 = vsel %vm553, %v859, %v860
      %v862 = vrot.slane %v677, 1
      %v863 = vrot.slane %v773, 1
      %v864 = vsel %vm553, %v862, %v863
      %v865 = vrot.slane %v678, 1
      %v866 = vrot.slane %v774, 1
      %v867 = vsel %vm553, %v865, %v866
      %868 = vrot.lane.b32.xlu0 %v846, 89
      %v869 = vpop.permute.xlu0 %868
      %870 = vrot.lane.b32.xlu0 %v849, 89
      %v871 = vpop.permute.xlu0 %870
      %872 = vrot.lane.b32.xlu0 %v852, 89
      %v873 = vpop.permute.xlu0 %872
      %874 = vrot.lane.b32.xlu0 %v855, 89
      %v875 = vpop.permute.xlu0 %874
      %876 = vrot.lane.b32.xlu0 %v858, 89
      %v877 = vpop.permute.xlu0 %876
      %878 = vrot.lane.b32.xlu0 %v861, 89
      %v879 = vpop.permute.xlu0 %878
      %880 = vrot.lane.b32.xlu0 %v864, 89
      %v881 = vpop.permute.xlu0 %880
      %882 = vrot.lane.b32.xlu0 %v867, 89
      %v883 = vpop.permute.xlu0 %882
      %893 = vrot.lane.b32.xlu0 %v672, 101
      %v894 = vpop.permute.xlu0 %893
      %895 = vrot.lane.b32.xlu0 %v673, 101
      %v896 = vpop.permute.xlu0 %895
      %897 = vrot.lane.b32.xlu0 %v674, 101
      %v898 = vpop.permute.xlu0 %897
      %899 = vrot.lane.b32.xlu0 %v675, 101
      %v900 = vpop.permute.xlu0 %899
      %901 = vrot.lane.b32.xlu0 %v676, 101
      %v902 = vpop.permute.xlu0 %901
      %903 = vrot.lane.b32.xlu0 %v677, 101
      %v904 = vpop.permute.xlu0 %903
      %905 = vrot.lane.b32.xlu0 %v678, 101
      %v906 = vpop.permute.xlu0 %905
      %907 = vrot.lane.b32.xlu0 %v791, 101
      %v908 = vpop.permute.xlu0 %907
      %v918 = vrot.slane %v791, 1
      %v919 = vrot.slane %v803, 1
      %v920 = vsel %vm553, %v918, %v919
      %921 = vrot.lane.b32.xlu0 %v849, 107
      %v922 = vpop.permute.xlu0 %921
      %923 = vrot.lane.b32.xlu0 %v852, 107
      %v924 = vpop.permute.xlu0 %923
      %925 = vrot.lane.b32.xlu0 %v855, 107
      %v926 = vpop.permute.xlu0 %925
      %927 = vrot.lane.b32.xlu0 %v858, 107
      %v928 = vpop.permute.xlu0 %927
      %929 = vrot.lane.b32.xlu0 %v861, 107
      %v930 = vpop.permute.xlu0 %929
      %931 = vrot.lane.b32.xlu0 %v864, 107
      %v932 = vpop.permute.xlu0 %931
      %933 = vrot.lane.b32.xlu0 %v867, 107
      %v934 = vpop.permute.xlu0 %933
      %935 = vrot.lane.b32.xlu0 %v920, 107
      %v936 = vpop.permute.xlu0 %935
      %vm945 = vcmask 23552
      %v946 = vsel %vm945, %v813, %v869
      %v947 = vsel %vm945, %v815, %v871
      %v948 = vsel %vm945, %v817, %v873
      %v949 = vsel %vm945, %v819, %v875
      %v950 = vsel %vm945, %v821, %v877
      %v951 = vsel %vm945, %v823, %v879
      %v952 = vsel %vm945, %v825, %v881
      %v953 = vsel %vm945, %v827, %v883
      %vm954 = vcmask 48128
      %v955 = vsel %vm954, %v946, %v894
      %v956 = vsel %vm954, %v947, %v896
      %v957 = vsel %vm954, %v948, %v898
      %v958 = vsel %vm954, %v949, %v900
      %v959 = vsel %vm954, %v950, %v902
      %v960 = vsel %vm954, %v951, %v904
      %v961 = vsel %vm954, %v952, %v906
      %v962 = vsel %vm954, %v953, %v908
      %vm963 = vcmask 72704
      %v964 = vsel %vm963, %v955, %v922
      %v965 = vsel %vm963, %v956, %v924
      %v966 = vsel %vm963, %v957, %v926
      %v967 = vsel %vm963, %v958, %v928
      %v968 = vsel %vm963, %v959, %v930
      %v969 = vsel %vm963, %v960, %v932
      %v970 = vsel %vm963, %v961, %v934
      %v971 = vsel %vm963, %v962, %v936
      %v972 = vld [vmem:[%s2] sm:$0x1]
      %v974 = vperm.slane %v972, 0
      %v976 = vadd.f32 %v964, %v974
      %v977 = vadd.f32 %v965, %v974
      %v978 = vadd.f32 %v966, %v974
      %v979 = vadd.f32 %v967, %v974
      %v980 = vadd.f32 %v968, %v974
      %v981 = vadd.f32 %v969, %v974
      %v982 = vadd.f32 %v970, %v974
      %v983 = vadd.f32 %v971, %v974
      %vm984 = vcmask 97280
      %985 = vst.msk [vmem:[%s170] sm:$0xff] %vm984, %v976
      %986 = vst.msk [vmem:[%s170 + $0x8] sm:$0xff] %vm984, %v977
      %987 = vst.msk [vmem:[%s170 + $0x10] sm:$0xff] %vm984, %v978
      %988 = vst.msk [vmem:[%s170 + $0x18] sm:$0xff] %vm984, %v979
      %989 = vst.msk [vmem:[%s170 + $0x20] sm:$0xff] %vm984, %v980
      %990 = vst.msk [vmem:[%s170 + $0x28] sm:$0xff] %vm984, %v981
      %991 = vst.msk [vmem:[%s170 + $0x30] sm:$0xff] %vm984, %v982
      %992 = vst.msk [vmem:[%s170 + $0x38] sm:$0xff] %vm984, %v983
      %p993 = scmp.lt.s32.totalorder %s14, 1
      %s994 = scalar_select %p993, %s14, 1
      %s995 = smul.addr %s994, 8
      %s996 = smul.addr %s995, 8
      %s997 = scalar_lea.vmem %s3, %s996
      // Predicated region
      $region33: #{vqvae_decoder.1} parent=31 // pred_check
        %p998 = pneg %p100
      $region34: #{vqvae_decoder.1} parent=31 // pred_check_branch
        %1000 = sbr.rel (%p998) target = $region36
      $region35: #{vqvae_decoder.1} parent=31 // pred_region
        _
      $region36: #{vqvae_decoder.1} parent=31 // pred_fallthru
        _
    $region32: #{vqvae_decoder.1} parent=5 // pred_fallthru
      _
    %p1001 = scmp.le.s32.totalorder 2, %s9
    // Predicated region
    $region37: #{vqvae_decoder.1} parent=5 // pred_check
      %p1002 = pneg %p1001
    $region38: #{vqvae_decoder.1} parent=5 // pred_check_branch
      %1004 = sbr.rel (%p1002) target = $region40
    $region39: #{vqvae_decoder.1} parent=5 // pred_region
      %s1005 = ssub.s32 %s9, 2
      // Predicated region
      $region41: #{vqvae_decoder.1} parent=39 // pred_check
        %p1006 = pneg %p106
      $region42: #{vqvae_decoder.1} parent=39 // pred_check_branch
        %1008 = sbr.rel (%p1006) target = $region44
      $region43: #{vqvae_decoder.1} parent=39 // pred_region
        %p1009 = scmp.lt.s32.totalorder %s15, 1
        %s1010 = scalar_select %p1009, %s15, 1
        %s1011 = smul.addr %s1010, 8
        %s1012 = smul.addr %s1011, 8
        %s1013 = scalar_lea.vmem %s3, %s1012
      $region44: #{vqvae_decoder.1} parent=39 // pred_fallthru
        _
    $region40: #{vqvae_decoder.1} parent=5 // pred_fallthru
      _
  $region6: #{vqvae_decoder.1} parent=0 // loop_footer
    %s13 = sadd.s32 1, %s9
  $region7: #{vqvae_decoder.1} parent=0 // loop_footer_branch
    %8 = sbr.rel target = $region3
  $region8: #{vqvae_decoder.1} parent=0 // loop_exit
    _

</llo_original>
